<compile_context>
chip_gen: v6e
topology: v6e:2x2x1
jax: 0.10.0
libtpu: 0.0.40
codegen_flags: <defaults>
</compile_context>

<pallas_src>
import math

import jax
import jax.numpy as jnp
from jax import lax
from jax.experimental import pallas as pl
from jax.experimental.pallas import tpu as pltpu


def _linear_kernel(x_ref, w_ref, b_ref, o_ref, acc_ref):
    # x_ref: (TM, TK)   w_ref: (TN, TK)  (native (out, in) layout)
    # b_ref: (1, TN)    o_ref: (TM, TN)  acc_ref: (TM, TN) f32 scratch
    k = pl.program_id(2)

    @pl.when(k == 0)
    def _():
        acc_ref[...] = jnp.zeros_like(acc_ref)

    # Contract over the K axis of both operands (i.e. x @ w^T) on the MXU,
    # accumulating in f32.
    acc_ref[...] += lax.dot_general(
        x_ref[...],
        w_ref[...],
        dimension_numbers=(((1,), (1,)), ((), ())),
        preferred_element_type=jnp.float32,
    )

    @pl.when(k == pl.num_programs(2) - 1)
    def _():
        # Fold the bias add into the finalize branch (once per output tile,
        # not once per K step), then cast/store.
        o_ref[...] = (acc_ref[...] + b_ref[...]).astype(o_ref.dtype)


def _round_up(x: int, m: int) -> int:
    return ((x + m - 1) // m) * m


def _choose_tile(dim: int, preferred: int, align: int) -> int:
    """Pick a tile size for `dim`.

    - If the dim is small, use it whole (no padding, satisfies the
      'equal-full-dim' escape of the (8,128) rule).
    - Otherwise prefer the largest `align`-multiple <= `preferred` that
      divides `dim` (no padding).
    - Otherwise fall back to the aligned preferred size (caller pads).
    """
    if dim <= preferred:
        return dim
    t = (preferred // align) * align
    while t >= align:
        if dim % t == 0:
            return t
        t -= align
    return (preferred // align) * align


def linear_forward(x, weight, bias, *, tile_m: int = 256, tile_n: int = 256,
                   tile_k: int = 512):
    """x: (..., in_features); weight: (out_features, in_features);
    bias: (out_features,)."""
    out_features, in_features = weight.shape
    lead_shape = x.shape[:-1]
    m = int(math.prod(lead_shape)) if lead_shape else 1
    x2d = x.reshape(m, in_features)

    tm = _choose_tile(m, tile_m, 8)
    tn = _choose_tile(out_features, tile_n, 128)
    tk = _choose_tile(in_features, tile_k, 128)

    m_p = _round_up(m, tm)
    n_p = _round_up(out_features, tn)
    k_p = _round_up(in_features, tk)

    # Padding is only needed when a dim exceeds the preferred tile and has no
    # aligned divisor; never for small/aligned shapes.
    if m_p != m or k_p != in_features:
        x2d = jnp.pad(x2d, ((0, m_p - m), (0, k_p - in_features)))
    w = weight  # keep native (out, in) layout — no HBM transpose copy
    if n_p != out_features or k_p != in_features:
        w = jnp.pad(w, ((0, n_p - out_features), (0, k_p - in_features)))
    b2d = bias.reshape(1, out_features)
    if n_p != out_features:
        b2d = jnp.pad(b2d, ((0, 0), (0, n_p - out_features)))

    grid = (m_p // tm, n_p // tn, k_p // tk)

    itemsize = jnp.dtype(x.dtype).itemsize
    cost = pl.CostEstimate(
        flops=2 * m * in_features * out_features,
        transcendentals=0,
        bytes_accessed=(m * in_features + out_features * in_features
                        + out_features + m * out_features) * itemsize,
    )
    # Double-buffered input tiles + f32 accumulator + double-buffered output,
    # with 2x headroom; clamp to [16 MiB, 64 MiB] so it is valid on v7x too.
    vmem_bytes = (2 * (tm * tk + tn * tk + tn) * itemsize
                  + tm * tn * 4
                  + 2 * tm * tn * itemsize)
    vmem_limit = min(max(2 * vmem_bytes, 16 * 1024 * 1024), 64 * 1024 * 1024)

    out = pl.pallas_call(
        _linear_kernel,
        out_shape=jax.ShapeDtypeStruct((m_p, n_p), x.dtype),
        grid_spec=pltpu.PrefetchScalarGridSpec(
            num_scalar_prefetch=0,
            grid=grid,
            in_specs=[
                pl.BlockSpec((tm, tk), lambda i, j, k: (i, k)),   # x tile
                pl.BlockSpec((tn, tk), lambda i, j, k: (j, k)),   # W tile (out, in)
                pl.BlockSpec((1, tn), lambda i, j, k: (0, j)),    # bias tile
            ],
            out_specs=pl.BlockSpec((tm, tn), lambda i, j, k: (i, j)),
            scratch_shapes=[pltpu.VMEM((tm, tn), jnp.float32)],
        ),
        compiler_params=pltpu.CompilerParams(
            dimension_semantics=("parallel", "parallel", "arbitrary"),
            vmem_limit_bytes=int(vmem_limit),
        ),
        cost_estimate=cost,
    )(x2d, w, b2d)

    if m_p != m or n_p != out_features:
        out = out[:m, :out_features]
    return out.reshape(*lead_shape, out_features)


def xavier_uniform(key, out_features, in_features, dtype=jnp.float32):
    # Matches torch.nn.init.xavier_uniform_ (gain=1.0):
    # bound = sqrt(6 / (fan_in + fan_out)), uniform in [-bound, bound].
    bound = math.sqrt(6.0 / (in_features + out_features))
    return jax.random.uniform(
        key, (out_features, in_features), dtype=dtype, minval=-bound, maxval=bound
    )


if __name__ == "__main__":
    key = jax.random.PRNGKey(0)
    k_x, k_w = jax.random.split(key)

    batch, seq = 2, 8
    in_features, out_features = 32, 64

    x = jax.random.normal(k_x, (batch, seq, in_features), dtype=jnp.float32)
    weight = xavier_uniform(k_w, out_features, in_features)
    bias = jnp.zeros((out_features,), dtype=jnp.float32)

    y = linear_forward(x, weight, bias)
    y = jax.block_until_ready(y)

    # Reference check against plain JAX
    y_ref = x @ weight.T + bias
    assert y.shape == (batch, seq, out_features)
    assert jnp.allclose(y, y_ref, atol=1e-5, rtol=1e-5)

    print("KERNEL_OK")
</pallas_src>

<mosaic_0001>
module attributes {stable_mosaic.version = 11 : i64} {
  func.func @_linear_kernel(%arg0: i32, %arg1: i32, %arg2: i32, %arg3: memref<16x32xf32, #tpu.memory_space<vmem>>, %arg4: memref<64x32xf32, #tpu.memory_space<vmem>>, %arg5: memref<1x64xf32, #tpu.memory_space<vmem>>, %arg6: memref<16x64xf32, #tpu.memory_space<vmem>>, %arg7: memref<16x64xf32, #tpu.memory_space<vmem>>) attributes {dimension_semantics = [#tpu.dimension_semantics<parallel>, #tpu.dimension_semantics<parallel>, #tpu.dimension_semantics<arbitrary>], iteration_bounds = array<i64: 1, 1, 1>, scalar_prefetch = 0 : i64, scratch_operands = 1 : i64, tpu.core_type = #tpu.core_type<tc>, window_params = [{transform_indices = @transform_0, window_bounds = array<i64: 16, 32>}, {transform_indices = @transform_1, window_bounds = array<i64: 64, 32>}, {transform_indices = @transform_2, window_bounds = array<i64: 1, 64>}, {transform_indices = @transform_3, window_bounds = array<i64: 16, 64>}]} {
    %c0_i32 = arith.constant 0 : i32
    %0 = arith.cmpi eq, %arg2, %c0_i32 : i32
    %1 = arith.extui %0 : i1 to i32
    %c0_i32_0 = arith.constant 0 : i32
    %2 = arith.cmpi ne, %1, %c0_i32_0 : i32
    scf.if %2 {
      %cst_10 = arith.constant 0.000000e+00 : f32
      %12 = vector.broadcast %cst_10 : f32 to vector<16x64xf32>
      %c0_11 = arith.constant 0 : index
      %c0_12 = arith.constant 0 : index
      %13 = vector.load %arg7[%c0_11, %c0_12] : memref<16x64xf32, #tpu.memory_space<vmem>>, vector<16x64xf32>
      tpu.vector_store %arg7[%c0_11, %c0_12], %12 {strides = array<i32>} : memref<16x64xf32, #tpu.memory_space<vmem>>, vector<16x64xf32>,
    } else {
    }
    %c0 = arith.constant 0 : index
    %c0_1 = arith.constant 0 : index
    %3 = vector.load %arg7[%c0, %c0_1] : memref<16x64xf32, #tpu.memory_space<vmem>>, vector<16x64xf32>
    %c0_2 = arith.constant 0 : index
    %c0_3 = arith.constant 0 : index
    %4 = vector.load %arg3[%c0_2, %c0_3] : memref<16x32xf32, #tpu.memory_space<vmem>>, vector<16x32xf32>
    %c0_4 = arith.constant 0 : index
    %c0_5 = arith.constant 0 : index
    %5 = vector.load %arg4[%c0_4, %c0_5] : memref<64x32xf32, #tpu.memory_space<vmem>>, vector<64x32xf32>
    %cst = arith.constant dense<0.000000e+00> : vector<16x64xf32>
    %6 = tpu.matmul %4, %5, %cst {dimension_numbers = #tpu.dot_dimension_numbers<[1], [1], [0], [0], [0, 0, 1, 0], [], []>} : vector<16x32xf32>, vector<64x32xf32>, vector<16x64xf32> -> vector<16x64xf32>
    %7 = arith.addf %3, %6 : vector<16x64xf32>
    %c0_6 = arith.constant 0 : index
    %c0_7 = arith.constant 0 : index
    %8 = vector.load %arg7[%c0_6, %c0_7] : memref<16x64xf32, #tpu.memory_space<vmem>>, vector<16x64xf32>
    tpu.vector_store %arg7[%c0_6, %c0_7], %7 {strides = array<i32>} : memref<16x64xf32, #tpu.memory_space<vmem>>, vector<16x64xf32>,
    %c0_i32_8 = arith.constant 0 : i32
    %9 = arith.cmpi eq, %arg2, %c0_i32_8 : i32
    %10 = arith.extui %9 : i1 to i32
    %c0_i32_9 = arith.constant 0 : i32
    %11 = arith.cmpi ne, %10, %c0_i32_9 : i32
    scf.if %11 {
      %c0_10 = arith.constant 0 : index
      %c0_11 = arith.constant 0 : index
      %12 = vector.load %arg7[%c0_10, %c0_11] : memref<16x64xf32, #tpu.memory_space<vmem>>, vector<16x64xf32>
      %c0_12 = arith.constant 0 : index
      %c0_13 = arith.constant 0 : index
      %13 = vector.load %arg5[%c0_12, %c0_13] : memref<1x64xf32, #tpu.memory_space<vmem>>, vector<1x64xf32>
      %14 = vector.broadcast %13 : vector<1x64xf32> to vector<16x64xf32>
      %15 = arith.addf %12, %14 : vector<16x64xf32>
      %c0_14 = arith.constant 0 : index
      %c0_15 = arith.constant 0 : index
      %16 = vector.load %arg6[%c0_14, %c0_15] : memref<16x64xf32, #tpu.memory_space<vmem>>, vector<16x64xf32>
      tpu.vector_store %arg6[%c0_14, %c0_15], %15 {strides = array<i32>} : memref<16x64xf32, #tpu.memory_space<vmem>>, vector<16x64xf32>,
    } else {
    }
    return
  }
  func.func @transform_0(%arg0: i32, %arg1: i32, %arg2: i32) -> (i32, i32) {
    %c0_i32 = arith.constant 0 : i32
    return %arg0, %arg2 : i32, i32
  }
  func.func @transform_1(%arg0: i32, %arg1: i32, %arg2: i32) -> (i32, i32) {
    %c0_i32 = arith.constant 0 : i32
    return %arg1, %arg2 : i32, i32
  }
  func.func @transform_2(%arg0: i32, %arg1: i32, %arg2: i32) -> (i32, i32) {
    %c0_i32 = arith.constant 0 : i32
    %c0_i32_0 = arith.constant 0 : i32
    return %c0_i32, %arg1 : i32, i32
  }
  func.func @transform_3(%arg0: i32, %arg1: i32, %arg2: i32) -> (i32, i32) {
    %c0_i32 = arith.constant 0 : i32
    return %arg0, %arg1 : i32, i32
  }
}

</mosaic_0001>

<llo_original>
// kernel: tpu_custom_call.1
$region0: #{tpu_custom_call.1}
  #allocation0 [shape = 'u32[]', space=smem, size = 0x4, offset = 0x4, fixed_abs, tag = 'smem constant byte address 0x4 - core index']
  #allocation1 [shape = 'u32[144,128]{1,0:T(1,128)}', space=vmem, size = 0x12000, scoped, tag = 'internal scratch']
  #allocation2 [shape = 'f32[16,64]{1,0:T(8,128)}', space=vmem, size = 0x2000, scoped, tag = 'scratch operand']
  %s0 = inlined_call_operand.vmem [shape: f32[16,32], index: 0, kind: input, shape index: {}]
  %s1 = inlined_call_operand.vmem [shape: f32[64,32], index: 1, kind: input, shape index: {}]
  %s2 = inlined_call_operand.vmem [shape: f32[1,64], index: 2, kind: input, shape index: {}]
  %s3 = inlined_call_operand.hbm [shape: f32[16,64], index: 3, kind: output, shape index: {}]
  %s4 = sld [smem:[#allocation0]]
  $region30: #{tpu_custom_call.1} parent=0
    _
  %s6 = ssub.s32 1, %s4
  %s7 = scalar_select 0, %s6, %s4
  $region1: #{tpu_custom_call.1} parent=0
    #allocation3 [shape = 'u8[8192]{0}', space=vmem, size = 0x2000, scoped, tag = 'output window, operand 0, single buffered']
    #allocation4 [shape = 's32[1]{0}', space=sflag, size = 0x4, scoped, tag = 'scoped memory for tpu_custom_call.1']
    %8 = vsyncpa [#allocation4], 0
    // Predicated region
    $region2: #{tpu_custom_call.1} parent=1 // pred_check
      _
    $region3: #{tpu_custom_call.1} parent=1 // pred_check_branch
      %10 = sbr.rel (0) target = $region5
    $region4: #{tpu_custom_call.1} parent=1 // pred_region
      _
    $region5: #{tpu_custom_call.1} parent=1 // pred_fallthru
      _
    // Predicated region
    $region6: #{tpu_custom_call.1} parent=1 // pred_check
      _
    $region7: #{tpu_custom_call.1} parent=1 // pred_check_branch
      %12 = sbr.rel (0) target = $region9
    $region8: #{tpu_custom_call.1} parent=1 // pred_region
      _
    $region9: #{tpu_custom_call.1} parent=1 // pred_fallthru
      _
    // Predicated region
    $region10: #{tpu_custom_call.1} parent=1 // pred_check
      _
    $region11: #{tpu_custom_call.1} parent=1 // pred_check_branch
      %14 = sbr.rel (0) target = $region13
    $region12: #{tpu_custom_call.1} parent=1 // pred_region
      _
    $region13: #{tpu_custom_call.1} parent=1 // pred_fallthru
      _
    %p15 = scmp.eq.s32.totalorder 0, 0
    // Predicated region
    $region14: #{tpu_custom_call.1} parent=1 // pred_check
      %p16 = pneg %p15
    $region15: #{tpu_custom_call.1} parent=1 // pred_check_branch
      %18 = sbr.rel (%p16) target = $region17
    $region16: #{tpu_custom_call.1} parent=1 // pred_region
      %vm19 = vcmask 523264
      %20 = vst.msk [vmem:[#allocation2] sm:$0xff] %vm19, 0.0
      %21 = vst.msk [vmem:[#allocation2 + $0x8] sm:$0xff] %vm19, 0.0
    $region17: #{tpu_custom_call.1} parent=1 // pred_fallthru
      _
    %v22 = vld [vmem:[#allocation2] sm:$0xff]
    %v23 = vld [vmem:[#allocation2 + $0x8] sm:$0xff]
    %v24 = vld [vmem:[%s0] sm:$0xff]
    %v25 = vld [vmem:[%s0 + $0x8] sm:$0xff]
    %v26 = vld [vmem:[%s1] sm:$0xff]
    %v27 = vld [vmem:[%s1 + $0x8] sm:$0xff]
    %v28 = vld [vmem:[%s1 + $0x10] sm:$0xff]
    %v29 = vld [vmem:[%s1 + $0x18] sm:$0xff]
    %v30 = vld [vmem:[%s1 + $0x20] sm:$0xff]
    %v31 = vld [vmem:[%s1 + $0x28] sm:$0xff]
    %v32 = vld [vmem:[%s1 + $0x30] sm:$0xff]
    %v33 = vld [vmem:[%s1 + $0x38] sm:$0xff]
    %vm34 = vcmask 261120
    %v36 = vsel %vm34, %v24, 0
    %v39 = vsel %vm34, %v25, 0
    %v42 = vsel %vm34, %v26, 0
    %v45 = vsel %vm34, %v27, 0
    %v48 = vsel %vm34, %v28, 0
    %v51 = vsel %vm34, %v29, 0
    %v54 = vsel %vm34, %v30, 0
    %v57 = vsel %vm34, %v31, 0
    %v60 = vsel %vm34, %v32, 0
    %v63 = vsel %vm34, %v33, 0
    %65 = vmatprep.subr.mxu0 0.0
    %66 = vmatpush1.xpose.msra.mxu0 0.0
    %67 = vmatprep.subr.mxu0 0.0
    %68 = vmatpush1.xpose.msra.mxu0 0.0
    %69 = vmatprep.subr.mxu0 0.0
    %70 = vmatpush1.xpose.msra.mxu0 0.0
    %71 = vmatprep.subr.mxu0 0.0
    %72 = vmatpush1.xpose.msra.mxu0 0.0
    %73 = vmatprep.subr.mxu0 0.0
    %74 = vmatpush1.xpose.msra.mxu0 0.0
    %75 = vmatprep.subr.mxu0 0.0
    %76 = vmatpush1.xpose.msra.mxu0 0.0
    %77 = vmatprep.subr.mxu0 0.0
    %78 = vmatpush1.xpose.msra.mxu0 0.0
    %79 = vmatprep.subr.mxu0 0.0
    %80 = vmatpush1.xpose.msra.mxu0 0.0
    %81 = vmatprep.subr.mxu0 0.0
    %82 = vmatpush1.xpose.msra.mxu0 %v63
    %83 = vmatprep.subr.mxu0 0.0
    %84 = vmatpush1.xpose.msra.mxu0 %v60
    %85 = vmatprep.subr.mxu0 0.0
    %86 = vmatpush1.xpose.msra.mxu0 %v57
    %87 = vmatprep.subr.mxu0 0.0
    %88 = vmatpush1.xpose.msra.mxu0 %v54
    %89 = vmatprep.subr.mxu0 0.0
    %90 = vmatpush1.xpose.msra.mxu0 %v51
    %91 = vmatprep.subr.mxu0 0.0
    %92 = vmatpush1.xpose.msra.mxu0 %v48
    %93 = vmatprep.subr.mxu0 0.0
    %94 = vmatpush1.xpose.msra.mxu0 %v45
    %95 = vmatprep.subr.mxu0 0.0
    %96 = vmatpush1.xpose.msra.mxu0 %v42
    %97 = vmatprep.subr.mxu0 0.0
    %98 = vmatpush2.xpose.msra.mxu0 0.0
    %99 = vmatprep.subr.mxu0 0.0
    %100 = vmatpush2.xpose.msra.mxu0 0.0
    %101 = vmatprep.subr.mxu0 0.0
    %102 = vmatpush2.xpose.msra.mxu0 0.0
    %103 = vmatprep.subr.mxu0 0.0
    %104 = vmatpush2.xpose.msra.mxu0 0.0
    %105 = vmatprep.subr.mxu0 0.0
    %106 = vmatpush2.xpose.msra.mxu0 0.0
    %107 = vmatprep.subr.mxu0 0.0
    %108 = vmatpush2.xpose.msra.mxu0 0.0
    %109 = vmatprep.subr.mxu0 0.0
    %110 = vmatpush2.xpose.msra.mxu0 0.0
    %111 = vmatprep.subr.mxu0 0.0
    %112 = vmatpush2.xpose.msra.mxu0 0.0
    %113 = vmatprep.subr.mxu0 0.0
    %114 = vmatpush2.xpose.msra.mxu0 0.0
    %115 = vmatprep.subr.mxu0 0.0
    %116 = vmatpush2.xpose.msra.mxu0 0.0
    %117 = vmatprep.subr.mxu0 0.0
    %118 = vmatpush2.xpose.msra.mxu0 0.0
    %119 = vmatprep.subr.mxu0 0.0
    %120 = vmatpush2.xpose.msra.mxu0 0.0
    %121 = vmatprep.subr.mxu0 0.0
    %122 = vmatpush2.xpose.msra.mxu0 0.0
    %123 = vmatprep.subr.mxu0 0.0
    %124 = vmatpush2.xpose.msra.mxu0 0.0
    %125 = vmatprep.subr.mxu0 0.0
    %126 = vmatpush2.xpose.msra.mxu0 0.0
    %127 = vmatprep.subr.mxu0 0.0
    %128 = vmatpush2.xpose.msra.mxu0 0.0
    %129 = vmatprep.mubr.f32.mxu0 0.0
    %130 = vmatmul.mubr.f32.gmra.mxu0 %v36
    %v131 = vpop.f32.mrf.mxu0
    %v132 = vadd.f32 0.0, %v131
    %v133 = vpop.f32.mrf.mxu0
    %134 = vmatprep.mubr.f32.mxu0 0.0
    %135 = vmatmul.mubr.f32.gmra.mxu0 %v39
    %v136 = vpop.f32.mrf.mxu0
    %v137 = vadd.f32 0.0, %v136
    %v138 = vpop.f32.mrf.mxu0
    %139 = vdwg.mxu0
    %v140 = vadd.f32 %v22, %v132
    %v141 = vadd.f32 %v23, %v137
    %vm142 = vcmask 523264
    %143 = vst.msk [vmem:[#allocation2] sm:$0xff] %vm142, %v140
    %144 = vst.msk [vmem:[#allocation2 + $0x8] sm:$0xff] %vm142, %v141
    // Predicated region
    $region18: #{tpu_custom_call.1} parent=1 // pred_check
      %p145 = pneg %p15
    $region19: #{tpu_custom_call.1} parent=1 // pred_check_branch
      %147 = sbr.rel (%p145) target = $region21
    $region20: #{tpu_custom_call.1} parent=1 // pred_region
      %v148 = vld [vmem:[#allocation2] sm:$0xff]
      %v149 = vld [vmem:[#allocation2 + $0x8] sm:$0xff]
      %v150 = vld [vmem:[%s2] sm:$0x1]
      %v152 = vlaneseq
      %v153 = vshrl.u32 %v152, 7
      %v154 = vsub.s32 0, %v153
      %v155 = vrot.slane %v150, %v154
      %v157 = vadd.f32 %v148, %v155
      %v158 = vadd.f32 %v149, %v155
      %159 = vst.msk [vmem:[#allocation3] sm:$0xff] %vm142, %v157
      %160 = vst.msk [vmem:[#allocation3 + $0x8] sm:$0xff] %vm142, %v158
    $region21: #{tpu_custom_call.1} parent=1 // pred_fallthru
      _
    // Predicated region
    $region22: #{tpu_custom_call.1} parent=1 // pred_check
      _
    $region23: #{tpu_custom_call.1} parent=1 // pred_check_branch
      %162 = sbr.rel (0) target = $region25
    $region24: #{tpu_custom_call.1} parent=1 // pred_region
      %s164 = ssub.s32 256, 256
      %165 = vsyncadd [#allocation4], %s164
      %s166 = sshll.u32 [#allocation3], 4
      %s167 = int_to_ptr.vmem [resolvable:$true] %s166
      %172 = dma.vmem_to_hbm [thread:$0]  %s167, 256, %s3, [#allocation4], 128, 128, 8
    $region25: #{tpu_custom_call.1} parent=1 // pred_fallthru
      _
    // Predicated region
    $region26: #{tpu_custom_call.1} parent=1 // pred_check
      _
    $region27: #{tpu_custom_call.1} parent=1 // pred_check_branch
      %174 = sbr.rel (0) target = $region29
    $region28: #{tpu_custom_call.1} parent=1 // pred_region
      %175 = dma.done [#allocation4], 256
    $region29: #{tpu_custom_call.1} parent=1 // pred_fallthru
      _
    %176 = vsyncpa [#allocation4], 1

</llo_original>
